<compile_context>
chip_gen: v7x
topology: tpu7x:2x2x1
jax: 0.10.0
libtpu: 0.0.40
codegen_flags: <defaults>
</compile_context>

<pallas_src>
import functools
import math

import jax
import jax.numpy as jnp
import numpy as np
from jax.experimental import pallas as pl
from jax.experimental.pallas import tpu as pltpu

LANE_PAD = 128  # pad tiny output-label dims to one full lane width

_VMEM_SPEC = pl.BlockSpec(memory_space=pltpu.MemorySpace.VMEM)


def _round_up(x, m):
    return ((x + m - 1) // m) * m


# --------------------------------------------------------------------------
# Kernel 1: NER classifier  (Linear(H,256) -> ReLU -> [Dropout] -> Linear(256,L))
# Row-tiled grid; bf16 matmul operands; lane-padded (rows, 128) output.
# --------------------------------------------------------------------------
def ner_mlp_kernel(x_ref, w1_ref, b1_ref, w2_ref, b2_ref, o_ref):
    x = x_ref[...]                                        # (TM, H) bf16
    h = jnp.dot(x, w1_ref[...], preferred_element_type=jnp.float32) + b1_ref[...]
    h = jnp.maximum(h, 0.0)                               # ReLU; Dropout(0.3) == identity (eval)
    o_ref[...] = (jnp.dot(h.astype(jnp.bfloat16), w2_ref[...],
                          preferred_element_type=jnp.float32) + b2_ref[...])


def ner_classifier(x_flat_bf16, params, num_ner_labels):
    rows, H = x_flat_bf16.shape
    TM = min(512, _round_up(rows, 8))
    rows_pad = _round_up(rows, TM)
    if rows_pad != rows:
        x_flat_bf16 = jnp.pad(x_flat_bf16, ((0, rows_pad - rows), (0, 0)))
    grid = (rows_pad // TM,)

    flops = 2 * rows_pad * (H * 256 + 256 * LANE_PAD)
    bytes_accessed = (rows_pad * H * 2 + rows_pad * LANE_PAD * 4
                      + (H * 256 + 256 * LANE_PAD) * 2 + (256 + LANE_PAD) * 4)

    out = pl.pallas_call(
        ner_mlp_kernel,
        out_shape=jax.ShapeDtypeStruct((rows_pad, LANE_PAD), jnp.float32),
        grid=grid,
        in_specs=[
            pl.BlockSpec((TM, H), lambda i: (i, 0)),          # activations: tiled rows
            pl.BlockSpec((H, 256), lambda i: (0, 0)),         # weights resident
            pl.BlockSpec((1, 256), lambda i: (0, 0)),
            pl.BlockSpec((256, LANE_PAD), lambda i: (0, 0)),
            pl.BlockSpec((1, LANE_PAD), lambda i: (0, 0)),
        ],
        out_specs=pl.BlockSpec((TM, LANE_PAD), lambda i: (i, 0)),
        compiler_params=pltpu.CompilerParams(
            dimension_semantics=("parallel",)),
        cost_estimate=pl.CostEstimate(flops=flops, transcendentals=0,
                                      bytes_accessed=bytes_accessed),
    )(x_flat_bf16, params["ner_w1"], params["ner_b1"],
      params["ner_w2"], params["ner_b2"])
    return out[:rows, :num_ner_labels]


# --------------------------------------------------------------------------
# Kernel 2 (fused): relation span pooling + relation classifier
#   pooling: build (P_pad, B*S) span / context masks from span scalars with a
#            lane iota, then pool with three MXU matmuls against (B*S, H)
#   MLP:     Linear(3H,512)->ReLU->LayerNorm -> Linear(512,256)->ReLU->LayerNorm
#            -> Linear(256, L_pad)   (concat avoided via 3 partial matmuls)
# --------------------------------------------------------------------------
def _layernorm(h, gamma, beta, eps=1e-5):
    mu = jnp.mean(h, axis=-1, keepdims=True)
    var = jnp.mean(jnp.square(h - mu), axis=-1, keepdims=True)
    return (h - mu) * jax.lax.rsqrt(var + eps) * gamma + beta


def rel_fused_kernel(spans_ref, x_ref,
                     w1a_ref, w1b_ref, w1c_ref, b1_ref, g1_ref, be1_ref,
                     w2_ref, b2_ref, g2_ref, be2_ref,
                     w3_ref, b3_ref,
                     o_ref, *, seq_len):
    P_pad = spans_ref.shape[0]
    BS = x_ref.shape[0]

    spans = spans_ref[...]                                # (P_pad, 8) int32
    b = spans[:, 0:1]
    s1 = spans[:, 1:2]
    e1 = spans[:, 2:3]
    s2 = spans[:, 3:4]
    e2 = spans[:, 4:5]
    boff = b * seq_len                                    # global row offset of batch b

    # One lane iota over the flattened (batch*seq) axis; masks are built once
    # for all pairs (no per-pair serial loop, no dynamic batch-row gathers).
    giota = jax.lax.broadcasted_iota(jnp.int32, (P_pad, BS), 1)
    m1 = ((giota >= boff + s1) & (giota <= boff + e1)).astype(jnp.float32)
    m2 = ((giota >= boff + s2) & (giota <= boff + e2)).astype(jnp.float32)
    mc = ((giota >= boff) & (giota < boff + seq_len)).astype(jnp.float32)

    c1 = jnp.maximum((e1 - s1 + 1).astype(jnp.float32), 1.0)
    c2 = jnp.maximum((e2 - s2 + 1).astype(jnp.float32), 1.0)

    x = x_ref[...]                                        # (BS, H) f32
    f1 = jnp.dot(m1, x, preferred_element_type=jnp.float32) / c1   # e1 span mean
    f2 = jnp.dot(m2, x, preferred_element_type=jnp.float32) / c2   # e2 span mean
    fc = jnp.dot(mc, x, preferred_element_type=jnp.float32) * (1.0 / seq_len)  # context mean

    # rel_classifier MLP (Dropouts == identity in eval); bf16 MXU operands,
    # f32 accumulation + f32 elementwise / LayerNorm.
    h = (jnp.dot(f1.astype(jnp.bfloat16), w1a_ref[...],
                 preferred_element_type=jnp.float32)
         + jnp.dot(f2.astype(jnp.bfloat16), w1b_ref[...],
                   preferred_element_type=jnp.float32)
         + jnp.dot(fc.astype(jnp.bfloat16), w1c_ref[...],
                   preferred_element_type=jnp.float32)
         + b1_ref[...])
    h = jnp.maximum(h, 0.0)
    h = _layernorm(h, g1_ref[...], be1_ref[...])
    h = jnp.dot(h.astype(jnp.bfloat16), w2_ref[...],
                preferred_element_type=jnp.float32) + b2_ref[...]
    h = jnp.maximum(h, 0.0)
    h = _layernorm(h, g2_ref[...], be2_ref[...])
    o_ref[...] = (jnp.dot(h.astype(jnp.bfloat16), w3_ref[...],
                          preferred_element_type=jnp.float32) + b3_ref[...])


def relation_head(spans, x_flat_f32, params, seq_len):
    P_pad = spans.shape[0]
    kernel = functools.partial(rel_fused_kernel, seq_len=seq_len)
    return pl.pallas_call(
        kernel,
        out_shape=jax.ShapeDtypeStruct((P_pad, LANE_PAD), jnp.float32),
        in_specs=[_VMEM_SPEC] * 14,
        out_specs=_VMEM_SPEC,
        compiler_params=pltpu.CompilerParams(vmem_limit_bytes=64 * 1024 * 1024),
    )(spans, x_flat_f32,
      params["w1a"], params["w1b"], params["w1c"], params["b1"],
      params["g1"], params["be1"],
      params["w2"], params["b2"], params["g2"], params["be2"],
      params["w3"], params["b3"])


# --------------------------------------------------------------------------
# Glue: losses (tiny scalar reductions, plain JAX), parameter init, span prep
# --------------------------------------------------------------------------
def cross_entropy(logits, labels, valid_mask):
    # mean CE over rows where valid_mask is True (matches nn.CrossEntropyLoss);
    # NB: returns 0 (not NaN like PyTorch) when no row is valid.
    logz = jax.nn.logsumexp(logits, axis=-1)
    picked = jnp.take_along_axis(logits, labels[:, None], axis=-1)[:, 0]
    per_row = logz - picked
    valid = valid_mask.astype(jnp.float32)
    return jnp.sum(per_row * valid) / jnp.maximum(jnp.sum(valid), 1.0)


def _init_linear(key, fan_in, fan_out):
    kw, kb = jax.random.split(key)
    bound = 1.0 / math.sqrt(fan_in)
    w = jax.random.uniform(kw, (fan_in, fan_out), jnp.float32, -bound, bound)
    b = jax.random.uniform(kb, (1, fan_out), jnp.float32, -bound, bound)
    return w, b


def _pad_cols(a, n):
    return jnp.pad(a, ((0, 0), (0, n - a.shape[1])))


def init_params(key, hidden, num_ner_labels, num_rel_labels):
    ks = jax.random.split(key, 5)
    p = {}
    w, b = _init_linear(ks[0], hidden, 256)
    p["ner_w1"] = w.astype(jnp.bfloat16)
    p["ner_b1"] = b
    w, b = _init_linear(ks[1], 256, num_ner_labels)
    p["ner_w2"] = _pad_cols(w, LANE_PAD).astype(jnp.bfloat16)   # lane-padded
    p["ner_b2"] = _pad_cols(b, LANE_PAD)

    w, b = _init_linear(ks[2], hidden * 3, 512)
    p["w1a"] = w[:hidden].astype(jnp.bfloat16)                  # e1 block
    p["w1b"] = w[hidden:2 * hidden].astype(jnp.bfloat16)        # e2 block
    p["w1c"] = w[2 * hidden:].astype(jnp.bfloat16)              # context block
    p["b1"] = b
    p["g1"] = jnp.ones((1, 512), jnp.float32)
    p["be1"] = jnp.zeros((1, 512), jnp.float32)
    w, b = _init_linear(ks[3], 512, 256)
    p["w2"] = w.astype(jnp.bfloat16)
    p["b2"] = b
    p["g2"] = jnp.ones((1, 256), jnp.float32)
    p["be2"] = jnp.zeros((1, 256), jnp.float32)
    w, b = _init_linear(ks[4], 256, num_rel_labels)
    p["w3"] = _pad_cols(w, LANE_PAD).astype(jnp.bfloat16)       # lane-padded
    p["b3"] = _pad_cols(b, LANE_PAD)
    return p


def build_relation_spans(rel_data, S):
    """Host-side mirror of _prepare_relation_features: emits one int32 row
    (batch, s1, e1, s2, e2, 0, 0, 0) per relation pair, padded/bucketed to a
    power-of-two pair count (min 8) to avoid per-call recompiles."""
    spans, labels = [], []
    for b, sample in enumerate(rel_data):
        if not sample.get("pairs", []):
            continue
        valid = [e for e in sample["entities"] if e["start"] <= e["end"]]
        if len(valid) < 2:
            continue
        # NB: pair indices reference the *filtered* entity list, exactly like
        # the PyTorch reference (entity_embeddings is built from valid_entities).
        clamped = [(max(0, min(e["start"], S - 1)), max(0, min(e["end"], S - 1)))
                   for e in valid]
        for (i1, i2), lab in zip(sample["pairs"], sample["labels"]):
            if i1 < len(valid) and i2 < len(valid):
                s1, e1 = clamped[i1]
                s2, e2 = clamped[i2]
                spans.append((b, s1, e1, s2, e2, 0, 0, 0))
                labels.append(int(lab))
    if not spans:
        return None, [], 0
    P = len(spans)
    P_pad = max(8, 1 << (P - 1).bit_length())        # bucket: pow2, >= 8 sublanes
    spans = spans + [(0, 0, 0, 0, 0, 0, 0, 0)] * (P_pad - P)
    return np.asarray(spans, np.int32), labels, P


def ner_relation_forward(params, sequence_output, attention_mask,
                         ner_labels=None, rel_data=None,
                         num_ner_labels=5, num_rel_labels=3):
    B, S, H = sequence_output.shape
    x_flat = sequence_output.reshape(B * S, H)

    ner_logits = ner_classifier(x_flat.astype(jnp.bfloat16), params,
                                num_ner_labels).reshape(B, S, num_ner_labels)

    total_loss = 0.0
    has_loss = False
    if ner_labels is not None:
        flat_logits = ner_logits.reshape(-1, num_ner_labels)
        flat_labels = ner_labels.reshape(-1)
        active = attention_mask.reshape(-1) == 1
        # CrossEntropyLoss(ignore_index=0) over active tokens
        valid = jnp.logical_and(active, flat_labels != 0)
        total_loss = total_loss + cross_entropy(flat_logits, flat_labels, valid)
        has_loss = True

    rel_logits = None
    if rel_data and any(len(s.get("pairs", [])) > 0 for s in rel_data):
        spans, rel_labels, P = build_relation_spans(rel_data, S)
        if spans is not None:
            rel_full = relation_head(jnp.asarray(spans), x_flat, params, S)
            rel_logits = rel_full[:P, :num_rel_labels]
            if rel_labels:
                lab = jnp.asarray(rel_labels, jnp.int32)
                total_loss = total_loss + cross_entropy(
                    rel_logits, lab, jnp.ones_like(lab, dtype=bool))
                has_loss = True

    return {"ner_logits": ner_logits,
            "rel_logits": rel_logits,
            "loss": total_loss if has_loss else None}


# --------------------------------------------------------------------------
# Pure-JAX reference (same bf16 matmul operands / f32 elementwise) for checks
# --------------------------------------------------------------------------
def _ref_ner(params, x_flat):
    h = jnp.dot(x_flat.astype(jnp.bfloat16), params["ner_w1"],
                preferred_element_type=jnp.float32) + params["ner_b1"]
    h = jnp.maximum(h, 0.0)
    return jnp.dot(h.astype(jnp.bfloat16), params["ner_w2"],
                   preferred_element_type=jnp.float32) + params["ner_b2"]


def _ref_rel(params, sequence_output, spans, P):
    f1, f2, fc = [], [], []
    for i in range(P):
        b, s1, e1, s2, e2 = [int(v) for v in spans[i, :5]]
        xb = sequence_output[b]
        f1.append(xb[s1:e1 + 1].mean(axis=0))
        f2.append(xb[s2:e2 + 1].mean(axis=0))
        fc.append(xb.mean(axis=0))
    f1, f2, fc = jnp.stack(f1), jnp.stack(f2), jnp.stack(fc)
    h = (jnp.dot(f1.astype(jnp.bfloat16), params["w1a"], preferred_element_type=jnp.float32)
         + jnp.dot(f2.astype(jnp.bfloat16), params["w1b"], preferred_element_type=jnp.float32)
         + jnp.dot(fc.astype(jnp.bfloat16), params["w1c"], preferred_element_type=jnp.float32)
         + params["b1"])
    h = jnp.maximum(h, 0.0)
    h = _layernorm(h, params["g1"], params["be1"])
    h = jnp.dot(h.astype(jnp.bfloat16), params["w2"],
                preferred_element_type=jnp.float32) + params["b2"]
    h = jnp.maximum(h, 0.0)
    h = _layernorm(h, params["g2"], params["be2"])
    return jnp.dot(h.astype(jnp.bfloat16), params["w3"],
                   preferred_element_type=jnp.float32) + params["b3"]


if __name__ == "__main__":
    B, S, H = 2, 16, 32          # small synthetic "bert hidden size"
    NUM_NER, NUM_REL = 5, 3

    key = jax.random.PRNGKey(0)
    k_params, k_seq, k_lab = jax.random.split(key, 3)

    params = init_params(k_params, H, NUM_NER, NUM_REL)
    sequence_output = jax.random.normal(k_seq, (B, S, H), jnp.float32)
    attention_mask = jnp.ones((B, S), jnp.int32)
    ner_labels = jax.random.randint(k_lab, (B, S), 0, NUM_NER)

    rel_data = [
        {"entities": [{"start": 1, "end": 3}, {"start": 5, "end": 7},
                      {"start": 9, "end": 9}],
         "pairs": [(0, 1), (1, 2)], "labels": [1, 2]},
        {"entities": [{"start": 0, "end": 2}, {"start": 4, "end": 6}],
         "pairs": [(0, 1)], "labels": [0]},
    ]

    out = ner_relation_forward(params, sequence_output, attention_mask,
                               ner_labels=ner_labels, rel_data=rel_data,
                               num_ner_labels=NUM_NER, num_rel_labels=NUM_REL)
    jax.block_until_ready(out["ner_logits"])
    jax.block_until_ready(out["rel_logits"])
    jax.block_until_ready(out["loss"])

    assert out["ner_logits"].shape == (B, S, NUM_NER)
    assert out["rel_logits"].shape == (3, NUM_REL)
    assert bool(jnp.isfinite(out["loss"]))

    # Numerical spot-check against the pure-JAX reference (loose tolerance for
    # bf16/MXU rounding differences).
    ref_ner = _ref_ner(params, sequence_output.reshape(B * S, H))
    ref_ner = ref_ner[:, :NUM_NER].reshape(B, S, NUM_NER)
    spans, _, P = build_relation_spans(rel_data, S)
    ref_rel = _ref_rel(params, sequence_output, spans, P)[:, :NUM_REL]
    assert jnp.allclose(out["ner_logits"], ref_ner, atol=5e-2, rtol=5e-2)
    assert jnp.allclose(out["rel_logits"], ref_rel, atol=5e-2, rtol=5e-2)

    print("KERNEL_OK")
</pallas_src>

<mosaic_0001>
module attributes {stable_mosaic.version = 11 : i64} {
  func.func @ner_mlp_kernel(%arg0: i32, %arg1: memref<32x32xbf16, #tpu.memory_space<vmem>>, %arg2: memref<32x256xbf16, #tpu.memory_space<vmem>>, %arg3: memref<1x256xf32, #tpu.memory_space<vmem>>, %arg4: memref<256x128xbf16, #tpu.memory_space<vmem>>, %arg5: memref<1x128xf32, #tpu.memory_space<vmem>>, %arg6: memref<32x128xf32, #tpu.memory_space<vmem>>) attributes {dimension_semantics = [#tpu.dimension_semantics<parallel>], iteration_bounds = array<i64: 1>, scalar_prefetch = 0 : i64, scratch_operands = 0 : i64, tpu.core_type = #tpu.core_type<tc>, window_params = [{transform_indices = @transform_0, window_bounds = array<i64: 32, 32>}, {pipeline_mode = #tpu.pipeline_mode<synchronous>, transform_indices = @transform_1, window_bounds = array<i64: 32, 256>}, {pipeline_mode = #tpu.pipeline_mode<synchronous>, transform_indices = @transform_2, window_bounds = array<i64: 1, 256>}, {pipeline_mode = #tpu.pipeline_mode<synchronous>, transform_indices = @transform_3, window_bounds = array<i64: 256, 128>}, {pipeline_mode = #tpu.pipeline_mode<synchronous>, transform_indices = @transform_4, window_bounds = array<i64: 1, 128>}, {transform_indices = @transform_5, window_bounds = array<i64: 32, 128>}]} {
    %c0 = arith.constant 0 : index
    %c0_0 = arith.constant 0 : index
    %0 = vector.load %arg1[%c0, %c0_0] : memref<32x32xbf16, #tpu.memory_space<vmem>>, vector<32x32xbf16>
    %c0_1 = arith.constant 0 : index
    %c0_2 = arith.constant 0 : index
    %1 = vector.load %arg2[%c0_1, %c0_2] : memref<32x256xbf16, #tpu.memory_space<vmem>>, vector<32x256xbf16>
    %cst = arith.constant dense<0.000000e+00> : vector<32x256xf32>
    %2 = tpu.matmul %0, %1, %cst {dimension_numbers = #tpu.dot_dimension_numbers<[1], [0], [0], [1], [0, 0, 1, 1], [], []>} : vector<32x32xbf16>, vector<32x256xbf16>, vector<32x256xf32> -> vector<32x256xf32>
    %c0_3 = arith.constant 0 : index
    %c0_4 = arith.constant 0 : index
    %3 = vector.load %arg3[%c0_3, %c0_4] : memref<1x256xf32, #tpu.memory_space<vmem>>, vector<1x256xf32>
    %4 = vector.broadcast %3 : vector<1x256xf32> to vector<32x256xf32>
    %5 = arith.addf %2, %4 : vector<32x256xf32>
    %cst_5 = arith.constant 0.000000e+00 : f32
    %6 = vector.broadcast %cst_5 : f32 to vector<32x256xf32>
    %7 = arith.maximumf %5, %6 : vector<32x256xf32>
    %8 = arith.truncf %7 : vector<32x256xf32> to vector<32x256xbf16>
    %c0_6 = arith.constant 0 : index
    %c0_7 = arith.constant 0 : index
    %9 = vector.load %arg4[%c0_6, %c0_7] : memref<256x128xbf16, #tpu.memory_space<vmem>>, vector<256x128xbf16>
    %cst_8 = arith.constant dense<0.000000e+00> : vector<32x128xf32>
    %10 = tpu.matmul %8, %9, %cst_8 {dimension_numbers = #tpu.dot_dimension_numbers<[1], [0], [0], [1], [0, 0, 1, 1], [], []>} : vector<32x256xbf16>, vector<256x128xbf16>, vector<32x128xf32> -> vector<32x128xf32>
    %c0_9 = arith.constant 0 : index
    %c0_10 = arith.constant 0 : index
    %11 = vector.load %arg5[%c0_9, %c0_10] : memref<1x128xf32, #tpu.memory_space<vmem>>, vector<1x128xf32>
    %12 = vector.broadcast %11 : vector<1x128xf32> to vector<32x128xf32>
    %13 = arith.addf %10, %12 : vector<32x128xf32>
    %c0_11 = arith.constant 0 : index
    %c0_12 = arith.constant 0 : index
    %14 = vector.load %arg6[%c0_11, %c0_12] : memref<32x128xf32, #tpu.memory_space<vmem>>, vector<32x128xf32>
    tpu.vector_store %arg6[%c0_11, %c0_12], %13 {strides = array<i32>} : memref<32x128xf32, #tpu.memory_space<vmem>>, vector<32x128xf32>,
    return
  }
  func.func @transform_0(%arg0: i32) -> (i32, i32) {
    %c0_i32 = arith.constant 0 : i32
    %c0_i32_0 = arith.constant 0 : i32
    return %arg0, %c0_i32 : i32, i32
  }
  func.func @transform_1(%arg0: i32) -> (i32, i32) {
    %c0_i32 = arith.constant 0 : i32
    %c0_i32_0 = arith.constant 0 : i32
    %c0_i32_1 = arith.constant 0 : i32
    return %c0_i32, %c0_i32_0 : i32, i32
  }
  func.func @transform_2(%arg0: i32) -> (i32, i32) {
    %c0_i32 = arith.constant 0 : i32
    %c0_i32_0 = arith.constant 0 : i32
    %c0_i32_1 = arith.constant 0 : i32
    return %c0_i32, %c0_i32_0 : i32, i32
  }
  func.func @transform_3(%arg0: i32) -> (i32, i32) {
    %c0_i32 = arith.constant 0 : i32
    %c0_i32_0 = arith.constant 0 : i32
    %c0_i32_1 = arith.constant 0 : i32
    return %c0_i32, %c0_i32_0 : i32, i32
  }
  func.func @transform_4(%arg0: i32) -> (i32, i32) {
    %c0_i32 = arith.constant 0 : i32
    %c0_i32_0 = arith.constant 0 : i32
    %c0_i32_1 = arith.constant 0 : i32
    return %c0_i32, %c0_i32_0 : i32, i32
  }
  func.func @transform_5(%arg0: i32) -> (i32, i32) {
    %c0_i32 = arith.constant 0 : i32
    %c0_i32_0 = arith.constant 0 : i32
    return %arg0, %c0_i32 : i32, i32
  }
}

</mosaic_0001>

<llo_original>
// kernel: tpu_custom_call.1
$region0: #{tpu_custom_call.1}
  #allocation0 [shape = 'u32[]', space=smem, size = 0x4, offset = 0x4, fixed_abs, tag = 'smem constant byte address 0x4 - core index']
  #allocation1 [shape = 'u32[144,128]{1,0:T(1,128)}', space=vmem, size = 0x12000, scoped, tag = 'internal scratch']
  %s0 = inlined_call_operand.hbm [shape: bf16[32,32], index: 0, kind: input, shape index: {}]
  %s1 = inlined_call_operand.hbm [shape: bf16[32,256], index: 1, kind: input, shape index: {}]
  %s2 = inlined_call_operand.vmem [shape: f32[1,256], index: 2, kind: input, shape index: {}]
  %s3 = inlined_call_operand.hbm [shape: bf16[256,128], index: 3, kind: input, shape index: {}]
  %s4 = inlined_call_operand.vmem [shape: f32[1,128], index: 4, kind: input, shape index: {}]
  %s5 = inlined_call_operand.hbm [shape: f32[32,128], index: 5, kind: output, shape index: {}]
  %s6 = sld [smem:[#allocation0]]
  $region42: #{tpu_custom_call.1} parent=0
    _
  %s8 = ssub.s32 1, %s6
  %s9 = scalar_select 0, %s8, %s6
  $region1: #{tpu_custom_call.1} parent=0
    #allocation2 [shape = 'u8[8192]{0}', space=vmem, size = 0x2000, scoped, tag = 'input window, operand 0, single buffered']
    #allocation3 [shape = 's32[1]{0}', space=sflag, size = 0x4, scoped, tag = 'scoped memory for tpu_custom_call.1']
    #allocation4 [shape = 's32[1]{0}', space=sflag, size = 0x4, scoped, tag = 'scoped memory for tpu_custom_call.1']
    #allocation5 [shape = 'u8[16384]{0}', space=vmem, size = 0x4000, scoped, tag = 'input window, operand 1, single buffered']
    #allocation6 [shape = 's32[1]{0}', space=sflag, size = 0x4, scoped, tag = 'scoped memory for tpu_custom_call.1']
    #allocation7 [shape = 'u8[65536]{0}', space=vmem, size = 0x10000, scoped, tag = 'input window, operand 3, single buffered']
    #allocation8 [shape = 'u8[16384]{0}', space=vmem, size = 0x4000, scoped, tag = 'output window, operand 0, single buffered']
    %10 = vsyncpa [#allocation3], 0
    %11 = vsyncpa [#allocation6], 0
    %12 = vsyncpa [#allocation4], 0
    // Predicated region
    $region2: #{tpu_custom_call.1} parent=1 // pred_check
      _
    $region3: #{tpu_custom_call.1} parent=1 // pred_check_branch
      %14 = sbr.rel (0) target = $region5
    $region4: #{tpu_custom_call.1} parent=1 // pred_region
      %s16 = ssub.s32 256, 256
      %17 = vsyncadd [#allocation3], %s16
      %s18 = sshll.u32 [#allocation2], 4
      %s19 = int_to_ptr.vmem [resolvable:$true] %s18
      %24 = dma.hbm_to_vmem [thread:$0]  %s0, 256, %s19, [#allocation3], 64, 64, 4
    $region5: #{tpu_custom_call.1} parent=1 // pred_fallthru
      _
    // Predicated region
    $region6: #{tpu_custom_call.1} parent=1 // pred_check
      _
    $region7: #{tpu_custom_call.1} parent=1 // pred_check_branch
      %26 = sbr.rel (0) target = $region9
    $region8: #{tpu_custom_call.1} parent=1 // pred_region
      %s28 = ssub.s32 512, 512
      %29 = vsyncadd [#allocation6], %s28
      %s30 = sshll.u32 [#allocation5], 4
      %s31 = int_to_ptr.vmem [resolvable:$true] %s30
      %36 = dma.hbm_to_vmem [thread:$0]  %s1, 512, %s31, [#allocation6], 128, 128, 8
    $region9: #{tpu_custom_call.1} parent=1 // pred_fallthru
      _
    // Predicated region
    $region10: #{tpu_custom_call.1} parent=1 // pred_check
      _
    $region11: #{tpu_custom_call.1} parent=1 // pred_check_branch
      %38 = sbr.rel (0) target = $region13
    $region12: #{tpu_custom_call.1} parent=1 // pred_region
      _
    $region13: #{tpu_custom_call.1} parent=1 // pred_fallthru
      _
    // Predicated region
    $region14: #{tpu_custom_call.1} parent=1 // pred_check
      _
    $region15: #{tpu_custom_call.1} parent=1 // pred_check_branch
      %40 = sbr.rel (0) target = $region17
    $region16: #{tpu_custom_call.1} parent=1 // pred_region
      %s42 = ssub.s32 2048, 2048
      %43 = vsyncadd [#allocation6], %s42
      %s44 = sshll.u32 [#allocation7], 4
      %s45 = int_to_ptr.vmem [resolvable:$true] %s44
      %50 = dma.hbm_to_vmem [thread:$0]  %s3, 2048, %s45, [#allocation6], 64, 64, 4
    $region17: #{tpu_custom_call.1} parent=1 // pred_fallthru
      _
    // Predicated region
    $region18: #{tpu_custom_call.1} parent=1 // pred_check
      _
    $region19: #{tpu_custom_call.1} parent=1 // pred_check_branch
      %52 = sbr.rel (0) target = $region21
    $region20: #{tpu_custom_call.1} parent=1 // pred_region
      _
    $region21: #{tpu_custom_call.1} parent=1 // pred_fallthru
      _
    // Predicated region
    $region22: #{tpu_custom_call.1} parent=1 // pred_check
      _
    $region23: #{tpu_custom_call.1} parent=1 // pred_check_branch
      %54 = sbr.rel (0) target = $region25
    $region24: #{tpu_custom_call.1} parent=1 // pred_region
      %55 = dma.done [#allocation3], 256
    $region25: #{tpu_custom_call.1} parent=1 // pred_fallthru
      _
    // Predicated region
    $region26: #{tpu_custom_call.1} parent=1 // pred_check
      _
    $region27: #{tpu_custom_call.1} parent=1 // pred_check_branch
      %57 = sbr.rel (0) target = $region29
    $region28: #{tpu_custom_call.1} parent=1 // pred_region
      %58 = dma.done [#allocation6], 512
    $region29: #{tpu_custom_call.1} parent=1 // pred_fallthru
      _
    // Predicated region
    $region30: #{tpu_custom_call.1} parent=1 // pred_check
      _
    $region31: #{tpu_custom_call.1} parent=1 // pred_check_branch
      %60 = sbr.rel (0) target = $region33
    $region32: #{tpu_custom_call.1} parent=1 // pred_region
      %61 = dma.done [#allocation6], 2048
    $region33: #{tpu_custom_call.1} parent=1 // pred_fallthru
      _
    %v63 = vld [vmem:[#allocation2] sm:$0xf]
    %v64 = vld [vmem:[#allocation2 + $0x4] sm:$0xf]
    %v65 = vld [vmem:[#allocation2 + $0x8] sm:$0xf]
    %v66 = vld [vmem:[#allocation2 + $0xc] sm:$0xf]
    %v67 = vld [vmem:[#allocation5] sm:$0xff]
    %v68 = vld [vmem:[#allocation5 + $0x8] sm:$0xff]
    %v69 = vld [vmem:[#allocation5 + $0x10] sm:$0xff]
    %v70 = vld [vmem:[#allocation5 + $0x18] sm:$0xff]
    %v71 = vld [vmem:[%s2] sm:$0x3]
    %v73 = vlaneseq
    %v74 = vshrl.u32 %v73, 7
    %v75 = vsub.s32 0, %v74
    %v76 = vrot.slane %v71, %v75
    %v77 = vlaneseq
    %v78 = vshrl.u32 %v77, 7
    %v79 = vsub.s32 1, %v78
    %v80 = vrot.slane %v71, %v79
    %v87 = vunpack.c.l.b16 %v63
    %v88 = vunpack.c.l.b16 %v64
    %v89 = vunpack.c.l.b16 %v65
    %v90 = vunpack.c.l.b16 %v66
    %v91 = vpack.c.b16 %v88, %v87
    %v92 = vpack.c.b16 %v90, %v89
    %v97 = vunpack.c.l.b16 %v67
    %v98 = vunpack.c.h.b16 %v67
    %v99 = vunpack.c.l.b16 %v68
    %v100 = vunpack.c.h.b16 %v68
    %v101 = vunpack.c.l.b16 %v69
    %v102 = vunpack.c.h.b16 %v69
    %v103 = vunpack.c.l.b16 %v70
    %v104 = vunpack.c.h.b16 %v70
    %v105 = vpack.c.b16 %v99, %v97
    %v106 = vpack.c.b16 %v100, %v98
    %v107 = vpack.c.b16 %v103, %v101
    %v108 = vpack.c.b16 %v104, %v102
    %vm113 = vcmask 261120
    %v115 = vsel %vm113, %v91, 0
    %v118 = vsel %vm113, %v92, 0
    %120 = vmatprep.subr.bf16.mxu0 %v106
    %121 = vmatpush1.bf16.msra.mxu0 %v105
    %122 = vmatprep.subr.bf16.mxu0 %v108
    %123 = vmatpush1.bf16.msra.mxu0 %v107
    %124 = vmatprep.subr.bf16.mxu0 0
    %125 = vmatpush1.bf16.msra.mxu0 0
    %126 = vmatprep.subr.bf16.mxu0 0
    %127 = vmatpush1.bf16.msra.mxu0 0
    %128 = vmatprep.subr.bf16.mxu0 0
    %129 = vmatpush1.bf16.msra.mxu0 0
    %130 = vmatprep.subr.bf16.mxu0 0
    %131 = vmatpush1.bf16.msra.mxu0 0
    %132 = vmatprep.subr.bf16.mxu0 0
    %133 = vmatpush1.bf16.msra.mxu0 0
    %134 = vmatprep.subr.bf16.mxu0 0
    %135 = vmatpush1.bf16.msra.mxu0 0
    %136 = vmatprep.subr.bf16.mxu0 0
    %137 = vmatpush1.bf16.msra.mxu0 0
    %138 = vmatprep.subr.bf16.mxu0 0
    %139 = vmatpush1.bf16.msra.mxu0 0
    %140 = vmatprep.subr.bf16.mxu0 0
    %141 = vmatpush1.bf16.msra.mxu0 0
    %142 = vmatprep.subr.bf16.mxu0 0
    %143 = vmatpush1.bf16.msra.mxu0 0
    %144 = vmatprep.subr.bf16.mxu0 0
    %145 = vmatpush1.bf16.msra.mxu0 0
    %146 = vmatprep.subr.bf16.mxu0 0
    %147 = vmatpush1.bf16.msra.mxu0 0
    %148 = vmatprep.subr.bf16.mxu0 0
    %149 = vmatpush1.bf16.msra.mxu0 0
    %150 = vmatprep.subr.bf16.mxu0 0
    %151 = vmatpush1.bf16.msra.mxu0 0
    %152 = vmatprep.mubr.bf16.mxu0 0
    %153 = vmatmul.mubr.bf16.gmra.mrb[0].mxu0 %v115
    %v154 = vpop.f32.mrb[0].mxu0
    %v155 = vadd.f32 %v76, %v154
    %v156 = vpop.f32.mrb[0].mxu0
    %v157 = vadd.f32 %v80, %v156
    %v158 = vpop.f32.mrb[0].mxu0
    %v159 = vadd.f32 %v76, %v158
    %v160 = vpop.f32.mrb[0].mxu0
    %v161 = vadd.f32 %v80, %v160
    %162 = vmatprep.mubr.bf16.mxu0 0
    %163 = vmatmul.mubr.bf16.gmra.mrb[0].mxu0 %v118
    %v164 = vpop.f32.mrb[0].mxu0
    %v165 = vadd.f32 %v76, %v164
    %v166 = vpop.f32.mrb[0].mxu0
    %v167 = vadd.f32 %v80, %v166
    %v168 = vpop.f32.mrb[0].mxu0
    %v169 = vadd.f32 %v76, %v168
    %v170 = vpop.f32.mrb[0].mxu0
    %v171 = vadd.f32 %v80, %v170
    %172 = vdwg.mxu0
    %v173 = vmax.f32 %v155, 0.0
    %v174 = vmax.f32 %v157, 0.0
    %v175 = vmax.f32 %v159, 0.0
    %v176 = vmax.f32 %v161, 0.0
    %v177 = vmax.f32 %v165, 0.0
    %v178 = vmax.f32 %v167, 0.0
    %v179 = vmax.f32 %v169, 0.0
    %v180 = vmax.f32 %v171, 0.0
    %v181 = vpack.c.bf16 %v175, %v173
    %v182 = vpack.c.bf16 %v176, %v174
    %v183 = vpack.c.bf16 %v179, %v177
    %v184 = vpack.c.bf16 %v180, %v178
    %v185 = vld [vmem:[#allocation7] sm:$0xf]
    %v186 = vld [vmem:[#allocation7 + $0x4] sm:$0xf]
    %v187 = vld [vmem:[#allocation7 + $0x8] sm:$0xf]
    %v188 = vld [vmem:[#allocation7 + $0xc] sm:$0xf]
    %v189 = vld [vmem:[#allocation7 + $0x10] sm:$0xf]
    %v190 = vld [vmem:[#allocation7 + $0x14] sm:$0xf]
    %v191 = vld [vmem:[#allocation7 + $0x18] sm:$0xf]
    %v192 = vld [vmem:[#allocation7 + $0x1c] sm:$0xf]
    %v193 = vld [vmem:[#allocation7 + $0x20] sm:$0xf]
    %v194 = vld [vmem:[#allocation7 + $0x24] sm:$0xf]
    %v195 = vld [vmem:[#allocation7 + $0x28] sm:$0xf]
    %v196 = vld [vmem:[#allocation7 + $0x2c] sm:$0xf]
    %v197 = vld [vmem:[#allocation7 + $0x30] sm:$0xf]
    %v198 = vld [vmem:[#allocation7 + $0x34] sm:$0xf]
    %v199 = vld [vmem:[#allocation7 + $0x38] sm:$0xf]
    %v200 = vld [vmem:[#allocation7 + $0x3c] sm:$0xf]
    %v201 = vld [vmem:[#allocation7 + $0x40] sm:$0xf]
    %v202 = vld [vmem:[#allocation7 + $0x44] sm:$0xf]
    %v203 = vld [vmem:[#allocation7 + $0x48] sm:$0xf]
    %v204 = vld [vmem:[#allocation7 + $0x4c] sm:$0xf]
    %v205 = vld [vmem:[#allocation7 + $0x50] sm:$0xf]
    %v206 = vld [vmem:[#allocation7 + $0x54] sm:$0xf]
    %v207 = vld [vmem:[#allocation7 + $0x58] sm:$0xf]
    %v208 = vld [vmem:[#allocation7 + $0x5c] sm:$0xf]
    %v209 = vld [vmem:[#allocation7 + $0x60] sm:$0xf]
    %v210 = vld [vmem:[#allocation7 + $0x64] sm:$0xf]
    %v211 = vld [vmem:[#allocation7 + $0x68] sm:$0xf]
    %v212 = vld [vmem:[#allocation7 + $0x6c] sm:$0xf]
    %v213 = vld [vmem:[#allocation7 + $0x70] sm:$0xf]
    %v214 = vld [vmem:[#allocation7 + $0x74] sm:$0xf]
    %v215 = vld [vmem:[#allocation7 + $0x78] sm:$0xf]
    %v216 = vld [vmem:[#allocation7 + $0x7c] sm:$0xf]
    %v217 = vld [vmem:[%s4] sm:$0x1]
    %v219 = vlaneseq
    %v220 = vshrl.u32 %v219, 7
    %v221 = vsub.s32 0, %v220
    %v222 = vrot.slane %v217, %v221
    %v256 = vunpack.c.l.b16 %v185
    %v257 = vunpack.c.l.b16 %v186
    %v258 = vunpack.c.l.b16 %v187
    %v259 = vunpack.c.l.b16 %v188
    %v260 = vunpack.c.l.b16 %v189
    %v261 = vunpack.c.l.b16 %v190
    %v262 = vunpack.c.l.b16 %v191
    %v263 = vunpack.c.l.b16 %v192
    %v264 = vunpack.c.l.b16 %v193
    %v265 = vunpack.c.l.b16 %v194
    %v266 = vunpack.c.l.b16 %v195
    %v267 = vunpack.c.l.b16 %v196
    %v268 = vunpack.c.l.b16 %v197
    %v269 = vunpack.c.l.b16 %v198
    %v270 = vunpack.c.l.b16 %v199
    %v271 = vunpack.c.l.b16 %v200
    %v272 = vunpack.c.l.b16 %v201
    %v273 = vunpack.c.l.b16 %v202
    %v274 = vunpack.c.l.b16 %v203
    %v275 = vunpack.c.l.b16 %v204
    %v276 = vunpack.c.l.b16 %v205
    %v277 = vunpack.c.l.b16 %v206
    %v278 = vunpack.c.l.b16 %v207
    %v279 = vunpack.c.l.b16 %v208
    %v280 = vunpack.c.l.b16 %v209
    %v281 = vunpack.c.l.b16 %v210
    %v282 = vunpack.c.l.b16 %v211
    %v283 = vunpack.c.l.b16 %v212
    %v284 = vunpack.c.l.b16 %v213
    %v285 = vunpack.c.l.b16 %v214
    %v286 = vunpack.c.l.b16 %v215
    %v287 = vunpack.c.l.b16 %v216
    %v288 = vpack.c.b16 %v257, %v256
    %v289 = vpack.c.b16 %v259, %v258
    %v290 = vpack.c.b16 %v261, %v260
    %v291 = vpack.c.b16 %v263, %v262
    %v292 = vpack.c.b16 %v265, %v264
    %v293 = vpack.c.b16 %v267, %v266
    %v294 = vpack.c.b16 %v269, %v268
    %v295 = vpack.c.b16 %v271, %v270
    %v296 = vpack.c.b16 %v273, %v272
    %v297 = vpack.c.b16 %v275, %v274
    %v298 = vpack.c.b16 %v277, %v276
    %v299 = vpack.c.b16 %v279, %v278
    %v300 = vpack.c.b16 %v281, %v280
    %v301 = vpack.c.b16 %v283, %v282
    %v302 = vpack.c.b16 %v285, %v284
    %v303 = vpack.c.b16 %v287, %v286
    %320 = vmatprep.subr.bf16.mxu0 0
    %321 = vmatpush1.bf16.msra.mxu0 %v288
    %322 = vmatprep.subr.bf16.mxu0 0
    %323 = vmatpush1.bf16.msra.mxu0 %v289
    %324 = vmatprep.subr.bf16.mxu0 0
    %325 = vmatpush1.bf16.msra.mxu0 %v290
    %326 = vmatprep.subr.bf16.mxu0 0
    %327 = vmatpush1.bf16.msra.mxu0 %v291
    %328 = vmatprep.subr.bf16.mxu0 0
    %329 = vmatpush1.bf16.msra.mxu0 %v292
    %330 = vmatprep.subr.bf16.mxu0 0
    %331 = vmatpush1.bf16.msra.mxu0 %v293
    %332 = vmatprep.subr.bf16.mxu0 0
    %333 = vmatpush1.bf16.msra.mxu0 %v294
    %334 = vmatprep.subr.bf16.mxu0 0
    %335 = vmatpush1.bf16.msra.mxu0 %v295
    %336 = vmatprep.subr.bf16.mxu0 0
    %337 = vmatpush1.bf16.msra.mxu0 %v296
    %338 = vmatprep.subr.bf16.mxu0 0
    %339 = vmatpush1.bf16.msra.mxu0 %v297
    %340 = vmatprep.subr.bf16.mxu0 0
    %341 = vmatpush1.bf16.msra.mxu0 %v298
    %342 = vmatprep.subr.bf16.mxu0 0
    %343 = vmatpush1.bf16.msra.mxu0 %v299
    %344 = vmatprep.subr.bf16.mxu0 0
    %345 = vmatpush1.bf16.msra.mxu0 %v300
    %346 = vmatprep.subr.bf16.mxu0 0
    %347 = vmatpush1.bf16.msra.mxu0 %v301
    %348 = vmatprep.subr.bf16.mxu0 0
    %349 = vmatpush1.bf16.msra.mxu0 %v302
    %350 = vmatprep.subr.bf16.mxu0 0
    %351 = vmatpush1.bf16.msra.mxu0 %v303
    %352 = vmatprep.mubr.bf16.mxu0 %v182
    %353 = vmatmul.mubr.bf16.gmra.mrb[0].mxu0 %v181
    %v354 = vpop.f32.mrb[0].mxu0
    %v355 = vadd.f32 %v222, %v354
    %v356 = vpop.f32.mrb[0].mxu0
    %v357 = vpop.f32.mrb[0].mxu0
    %v358 = vadd.f32 %v222, %v357
    %v359 = vpop.f32.mrb[0].mxu0
    %360 = vmatprep.mubr.bf16.mxu0 %v184
    %361 = vmatmul.mubr.bf16.gmra.mrb[0].mxu0 %v183
    %v362 = vpop.f32.mrb[0].mxu0
    %v363 = vadd.f32 %v222, %v362
    %v364 = vpop.f32.mrb[0].mxu0
    %v365 = vpop.f32.mrb[0].mxu0
    %v366 = vadd.f32 %v222, %v365
    %v367 = vpop.f32.mrb[0].mxu0
    %368 = vdwg.mxu0
    %369 = vst [vmem:[#allocation8] sm:$0xff] %v355
    %370 = vst [vmem:[#allocation8 + $0x8] sm:$0xff] %v358
    %371 = vst [vmem:[#allocation8 + $0x10] sm:$0xff] %v363
    %372 = vst [vmem:[#allocation8 + $0x18] sm:$0xff] %v366
    // Predicated region
    $region34: #{tpu_custom_call.1} parent=1 // pred_check
      _
    $region35: #{tpu_custom_call.1} parent=1 // pred_check_branch
      %374 = sbr.rel (0) target = $region37
    $region36: #{tpu_custom_call.1} parent=1 // pred_region
      %s376 = ssub.s32 512, 512
      %377 = vsyncadd [#allocation4], %s376
      %s378 = sshll.u32 [#allocation8], 4
      %s379 = int_to_ptr.vmem [resolvable:$true] %s378
      %384 = dma.vmem_to_hbm [thread:$0]  %s379, 512, %s5, [#allocation4], 128, 128, 8
    $region37: #{tpu_custom_call.1} parent=1 // pred_fallthru
      _
    // Predicated region
    $region38: #{tpu_custom_call.1} parent=1 // pred_check
      _
    $region39: #{tpu_custom_call.1} parent=1 // pred_check_branch
      %386 = sbr.rel (0) target = $region41
    $region40: #{tpu_custom_call.1} parent=1 // pred_region
      %387 = dma.done [#allocation4], 512
    $region41: #{tpu_custom_call.1} parent=1 // pred_fallthru
      _
    %388 = vsyncpa [#allocation3], 1
    %389 = vsyncpa [#allocation6], 1
    %390 = vsyncpa [#allocation4], 1

</llo_original>
